<compile_context>
chip_gen: v7x
topology: tpu7x:2x2x1
jax: 0.10.0
libtpu: 0.0.40
codegen_flags: <defaults>
</compile_context>

<pallas_src>
import jax
import jax.numpy as jnp
from jax.experimental import pallas as pl
from jax.experimental.pallas import tpu as pltpu


HIDDEN = 64
OUT_PAD = 128          # lane-dense output slab width
NEG_INF = -1e30        # bias for padded logit columns (vanishes in softmax)


# --------------------------------------------------------------------------
# Kernels
# --------------------------------------------------------------------------

def prologue_kernel(x_ref, w0_ref, b0_ref, wc1_ref, h_ref, m1_ref):
    """Row-tiled:  h = relu(x @ W0 + b0);  m1 = h @ Wc1  (stored bf16)."""
    h = jnp.dot(x_ref[...], w0_ref[...],
                preferred_element_type=jnp.float32) + b0_ref[...]
    h = jnp.maximum(h, 0.0)
    h_ref[...] = h
    m1_ref[...] = jnp.dot(h, wc1_ref[...],
                          preferred_element_type=jnp.float32).astype(jnp.bfloat16)


def conv1_kernel(adj_ref, m_ref, h_ref, b_ref, w_next_ref, m2_ref, acc_ref):
    """Tiled propagate for conv1; last-k epilogue emits m2 = relu(.) @ Wc2."""
    k = pl.program_id(1)

    @pl.when(k == 0)
    def _():
        acc_ref[...] = jnp.zeros_like(acc_ref)

    # bf16 x bf16 -> f32 accumulation on the MXU (dominant work).
    acc_ref[...] += jnp.dot(adj_ref[...], m_ref[...],
                            preferred_element_type=jnp.float32)

    @pl.when(k == pl.num_programs(1) - 1)
    def _():
        x1 = jnp.maximum(acc_ref[...] + b_ref[...] + h_ref[...], 0.0)
        m2_ref[...] = jnp.dot(x1, w_next_ref[...],
                              preferred_element_type=jnp.float32).astype(jnp.bfloat16)


def conv2_kernel(adj_ref, m_ref, h_ref, b_ref, w1_ref, b1_ref, out_ref, acc_ref):
    """Tiled propagate for conv2; last-k epilogue does lin1 + log_softmax."""
    k = pl.program_id(1)

    @pl.when(k == 0)
    def _():
        acc_ref[...] = jnp.zeros_like(acc_ref)

    acc_ref[...] += jnp.dot(adj_ref[...], m_ref[...],
                            preferred_element_type=jnp.float32)

    @pl.when(k == pl.num_programs(1) - 1)
    def _():
        x2 = jnp.maximum(acc_ref[...] + b_ref[...] + h_ref[...], 0.0)
        # lin1 on a lane-dense, 128-wide padded slab; padded cols carry -1e30 bias.
        z = jnp.dot(x2, w1_ref[...],
                    preferred_element_type=jnp.float32) + b1_ref[...]
        zmax = jnp.max(z, axis=1, keepdims=True)
        zs = z - zmax
        lse = jnp.log(jnp.sum(jnp.exp(zs), axis=1, keepdims=True))
        out_ref[...] = zs - lse


# --------------------------------------------------------------------------
# Glue (plain JAX)
# --------------------------------------------------------------------------

def build_normalized_adjacency(edge_index, num_nodes):
    """Dense GCN-normalized adjacency A_hat = D^-1/2 (A + A^T + I) D^-1/2."""
    src, dst = edge_index[0], edge_index[1]
    adj = jnp.zeros((num_nodes, num_nodes), dtype=jnp.float32)
    adj = adj.at[src, dst].set(1.0)
    adj = jnp.maximum(adj, adj.T)                       # symmetrize
    adj = adj + jnp.eye(num_nodes, dtype=jnp.float32)   # self loops
    deg = jnp.sum(adj, axis=1)
    d_inv_sqrt = jnp.where(deg > 0, 1.0 / jnp.sqrt(deg), 0.0)
    return adj * d_inv_sqrt[:, None] * d_inv_sqrt[None, :]


def init_params(key, in_channel, out_channel, hidden=HIDDEN):
    """Deterministic synthetic parameters (shapes match the torch module)."""
    ks = jax.random.split(key, 5)
    scale = 0.1

    def lin(k, fan_in, fan_out):
        kw, kb = jax.random.split(k)
        w = scale * jax.random.normal(kw, (fan_in, fan_out), jnp.float32)
        b = scale * jax.random.normal(kb, (1, fan_out), jnp.float32)
        return w, b

    w0, b0 = lin(ks[0], in_channel, hidden)     # lin0: in_channel -> 64
    wc1, bc1 = lin(ks[1], hidden, hidden)       # conv1: 64 -> 64
    wc2, bc2 = lin(ks[2], hidden, hidden)       # conv2: 64 -> 64
    w1, b1 = lin(ks[3], hidden, out_channel)    # lin1: 64 -> out_channels
    # lin00 exists in __init__ but is unused in forward; omitted.
    return (w0, b0, wc1, bc1, wc2, bc2, w1, b1)


def _round_up(x, m):
    return ((x + m - 1) // m) * m


def _pick_tile(n_pad):
    # n_pad is always a multiple of 128; prefer larger tiles (<= 512) so the
    # bf16 adj double-buffer stays ~1 MiB and the per-step overhead amortises.
    for t in (512, 256, 128):
        if n_pad % t == 0:
            return t
    return 128


# --------------------------------------------------------------------------
# Forward pass
# --------------------------------------------------------------------------

def llm_filter_forward(x, edge_index, params):
    (w0, b0, wc1, bc1, wc2, bc2, w1, b1) = params
    n, in_ch = x.shape
    out_ch = w1.shape[1]

    n_pad = _round_up(max(n, 128), 128)
    tm = tk = _pick_tile(n_pad)
    nm, nk = n_pad // tm, n_pad // tk

    # Pad node dimension (zero rows/cols do not pollute real rows) and cast the
    # adjacency once to bf16.
    adj = build_normalized_adjacency(edge_index, n)
    adj_pad = jnp.zeros((n_pad, n_pad), jnp.float32).at[:n, :n].set(adj)
    adj_pad = adj_pad.astype(jnp.bfloat16)
    x_pad = jnp.zeros((n_pad, in_ch), jnp.float32).at[:n].set(x)

    # Lane-dense lin1: pad to 128 output lanes, padded biases at -1e30 so the
    # padded logits contribute exp(.) == 0 to the softmax normaliser.
    w1_pad = jnp.zeros((HIDDEN, OUT_PAD), jnp.float32).at[:, :out_ch].set(w1)
    b1_pad = jnp.full((1, OUT_PAD), NEG_INF, jnp.float32).at[:, :out_ch].set(b1)

    # ---- prologue: h = relu(x @ W0 + b0), m1 = h @ Wc1 (row-parallel) ----
    h, m1 = pl.pallas_call(
        prologue_kernel,
        out_shape=(jax.ShapeDtypeStruct((n_pad, HIDDEN), jnp.float32),
                   jax.ShapeDtypeStruct((n_pad, HIDDEN), jnp.bfloat16)),
        grid_spec=pltpu.PrefetchScalarGridSpec(
            num_scalar_prefetch=0,
            grid=(nm,),
            in_specs=[
                pl.BlockSpec((tm, in_ch), lambda i: (i, 0)),
                pl.BlockSpec((in_ch, HIDDEN), lambda i: (0, 0)),
                pl.BlockSpec((1, HIDDEN), lambda i: (0, 0)),
                pl.BlockSpec((HIDDEN, HIDDEN), lambda i: (0, 0)),
            ],
            out_specs=[
                pl.BlockSpec((tm, HIDDEN), lambda i: (i, 0)),
                pl.BlockSpec((tm, HIDDEN), lambda i: (i, 0)),
            ],
        ),
        compiler_params=pltpu.CompilerParams(dimension_semantics=("parallel",)),
        cost_estimate=pl.CostEstimate(
            flops=2 * n_pad * in_ch * HIDDEN + 2 * n_pad * HIDDEN * HIDDEN,
            transcendentals=0,
            bytes_accessed=n_pad * in_ch * 4 + n_pad * HIDDEN * (4 + 2)),
    )(x_pad, w0, b0, wc1)

    # Shared tiled specs for the two propagation passes.
    adj_spec = pl.BlockSpec((tm, tk), lambda i, k: (i, k))
    m_in_spec = pl.BlockSpec((tk, HIDDEN), lambda i, k: (k, 0))
    row_spec = pl.BlockSpec((tm, HIDDEN), lambda i, k: (i, 0))
    bias_spec = pl.BlockSpec((1, HIDDEN), lambda i, k: (0, 0))
    wh_spec = pl.BlockSpec((HIDDEN, HIDDEN), lambda i, k: (0, 0))

    prop_flops = 2 * n_pad * n_pad * HIDDEN
    adj_bytes = n_pad * n_pad * 2                 # bf16 adjacency stream
    m_bytes = nm * n_pad * HIDDEN * 2             # m tiles reloaded per row tile

    # ---- conv1: x1 = relu(A @ m1 + bc1 + h);  m2 = x1 @ Wc2 ----
    m2 = pl.pallas_call(
        conv1_kernel,
        out_shape=jax.ShapeDtypeStruct((n_pad, HIDDEN), jnp.bfloat16),
        grid_spec=pltpu.PrefetchScalarGridSpec(
            num_scalar_prefetch=0,
            grid=(nm, nk),
            in_specs=[adj_spec, m_in_spec, row_spec, bias_spec, wh_spec],
            out_specs=pl.BlockSpec((tm, HIDDEN), lambda i, k: (i, 0)),
            scratch_shapes=[pltpu.VMEM((tm, HIDDEN), jnp.float32)],
        ),
        compiler_params=pltpu.CompilerParams(
            dimension_semantics=("parallel", "arbitrary")),
        cost_estimate=pl.CostEstimate(
            flops=prop_flops + 2 * n_pad * HIDDEN * HIDDEN,
            transcendentals=0,
            bytes_accessed=adj_bytes + m_bytes + n_pad * HIDDEN * (4 + 2)),
    )(adj_pad, m1, h, bc1, wc2)

    # ---- conv2 + lin1 + log_softmax ----
    z_pad = pl.pallas_call(
        conv2_kernel,
        out_shape=jax.ShapeDtypeStruct((n_pad, OUT_PAD), jnp.float32),
        grid_spec=pltpu.PrefetchScalarGridSpec(
            num_scalar_prefetch=0,
            grid=(nm, nk),
            in_specs=[adj_spec, m_in_spec, row_spec, bias_spec,
                      pl.BlockSpec((HIDDEN, OUT_PAD), lambda i, k: (0, 0)),
                      pl.BlockSpec((1, OUT_PAD), lambda i, k: (0, 0))],
            out_specs=pl.BlockSpec((tm, OUT_PAD), lambda i, k: (i, 0)),
            scratch_shapes=[pltpu.VMEM((tm, HIDDEN), jnp.float32)],
        ),
        compiler_params=pltpu.CompilerParams(
            dimension_semantics=("parallel", "arbitrary")),
        cost_estimate=pl.CostEstimate(
            flops=prop_flops + 2 * n_pad * HIDDEN * OUT_PAD,
            transcendentals=n_pad * (OUT_PAD + 1),
            bytes_accessed=adj_bytes + m_bytes
                           + n_pad * (HIDDEN * 4 + HIDDEN * 2 + OUT_PAD * 4)),
    )(adj_pad, m2, h, bc2, w1_pad, b1_pad)

    return z_pad[:n, :out_ch]


# --------------------------------------------------------------------------
# Pure-JAX reference (same bf16 casts as the kernel path)
# --------------------------------------------------------------------------

def llm_filter_reference(x, edge_index, params):
    (w0, b0, wc1, bc1, wc2, bc2, w1, b1) = params
    n = x.shape[0]
    adj = build_normalized_adjacency(edge_index, n).astype(jnp.bfloat16)
    h = jax.nn.relu(x @ w0 + b0)
    m1 = (h @ wc1).astype(jnp.bfloat16)
    x1 = jax.nn.relu(jnp.dot(adj, m1, preferred_element_type=jnp.float32) + bc1 + h)
    m2 = (x1 @ wc2).astype(jnp.bfloat16)
    x2 = jax.nn.relu(jnp.dot(adj, m2, preferred_element_type=jnp.float32) + bc2 + h)
    z = x2 @ w1 + b1
    return jax.nn.log_softmax(z, axis=1)


if __name__ == "__main__":
    key = jax.random.PRNGKey(0)
    k_x, k_e, k_p = jax.random.split(key, 3)

    N = 300          # nodes (pads to 384 -> 3x3 tile grid of 128x128 tiles)
    IN_CH = 16       # in_channel
    OUT_CH = 8       # out_channel
    E = 900          # edges

    x = jax.random.normal(k_x, (N, IN_CH), jnp.float32)
    edge_index = jax.random.randint(k_e, (2, E), 0, N, dtype=jnp.int32)
    params = init_params(k_p, IN_CH, OUT_CH)

    out = llm_filter_forward(x, edge_index, params)
    jax.block_until_ready(out)

    assert out.shape == (N, OUT_CH)
    assert bool(jnp.all(jnp.isfinite(out)))
    # rows of log_softmax must (log-)sum to ~0
    row_lse = jax.scipy.special.logsumexp(out, axis=1)
    assert jnp.allclose(row_lse, 0.0, atol=1e-3)
    # compare against a pure-JAX reference with matching precision choices
    ref = llm_filter_reference(x, edge_index, params)
    assert jnp.allclose(out, ref, atol=5e-2, rtol=5e-2)
    print("KERNEL_OK")
</pallas_src>

<mosaic_0001>
module attributes {stable_mosaic.version = 11 : i64} {
  func.func @prologue_kernel(%arg0: i32, %arg1: memref<128x16xf32, #tpu.memory_space<vmem>>, %arg2: memref<16x64xf32, #tpu.memory_space<vmem>>, %arg3: memref<1x64xf32, #tpu.memory_space<vmem>>, %arg4: memref<64x64xf32, #tpu.memory_space<vmem>>, %arg5: memref<128x64xf32, #tpu.memory_space<vmem>>, %arg6: memref<128x64xbf16, #tpu.memory_space<vmem>>) attributes {dimension_semantics = [#tpu.dimension_semantics<parallel>], iteration_bounds = array<i64: 3>, scalar_prefetch = 0 : i64, scratch_operands = 0 : i64, tpu.core_type = #tpu.core_type<tc>, window_params = [{transform_indices = @transform_0, window_bounds = array<i64: 128, 16>}, {pipeline_mode = #tpu.pipeline_mode<synchronous>, transform_indices = @transform_1, window_bounds = array<i64: 16, 64>}, {pipeline_mode = #tpu.pipeline_mode<synchronous>, transform_indices = @transform_2, window_bounds = array<i64: 1, 64>}, {pipeline_mode = #tpu.pipeline_mode<synchronous>, transform_indices = @transform_3, window_bounds = array<i64: 64, 64>}, {transform_indices = @transform_4, window_bounds = array<i64: 128, 64>}, {transform_indices = @transform_5, window_bounds = array<i64: 128, 64>}]} {
    %c0 = arith.constant 0 : index
    %c0_0 = arith.constant 0 : index
    %0 = vector.load %arg1[%c0, %c0_0] : memref<128x16xf32, #tpu.memory_space<vmem>>, vector<128x16xf32>
    %c0_1 = arith.constant 0 : index
    %c0_2 = arith.constant 0 : index
    %1 = vector.load %arg2[%c0_1, %c0_2] : memref<16x64xf32, #tpu.memory_space<vmem>>, vector<16x64xf32>
    %cst = arith.constant dense<0.000000e+00> : vector<128x64xf32>
    %2 = tpu.matmul %0, %1, %cst {dimension_numbers = #tpu.dot_dimension_numbers<[1], [0], [0], [1], [0, 0, 1, 1], [], []>} : vector<128x16xf32>, vector<16x64xf32>, vector<128x64xf32> -> vector<128x64xf32>
    %c0_3 = arith.constant 0 : index
    %c0_4 = arith.constant 0 : index
    %3 = vector.load %arg3[%c0_3, %c0_4] : memref<1x64xf32, #tpu.memory_space<vmem>>, vector<1x64xf32>
    %4 = vector.broadcast %3 : vector<1x64xf32> to vector<128x64xf32>
    %5 = arith.addf %2, %4 : vector<128x64xf32>
    %cst_5 = arith.constant 0.000000e+00 : f32
    %6 = vector.broadcast %cst_5 : f32 to vector<128x64xf32>
    %7 = arith.maximumf %5, %6 : vector<128x64xf32>
    %c0_6 = arith.constant 0 : index
    %c0_7 = arith.constant 0 : index
    %8 = vector.load %arg5[%c0_6, %c0_7] : memref<128x64xf32, #tpu.memory_space<vmem>>, vector<128x64xf32>
    tpu.vector_store %arg5[%c0_6, %c0_7], %7 {strides = array<i32>} : memref<128x64xf32, #tpu.memory_space<vmem>>, vector<128x64xf32>,
    %c0_8 = arith.constant 0 : index
    %c0_9 = arith.constant 0 : index
    %9 = vector.load %arg4[%c0_8, %c0_9] : memref<64x64xf32, #tpu.memory_space<vmem>>, vector<64x64xf32>
    %cst_10 = arith.constant dense<0.000000e+00> : vector<128x64xf32>
    %10 = tpu.matmul %7, %9, %cst_10 {dimension_numbers = #tpu.dot_dimension_numbers<[1], [0], [0], [1], [0, 0, 1, 1], [], []>} : vector<128x64xf32>, vector<64x64xf32>, vector<128x64xf32> -> vector<128x64xf32>
    %11 = arith.truncf %10 : vector<128x64xf32> to vector<128x64xbf16>
    %c0_11 = arith.constant 0 : index
    %c0_12 = arith.constant 0 : index
    %12 = vector.load %arg6[%c0_11, %c0_12] : memref<128x64xbf16, #tpu.memory_space<vmem>>, vector<128x64xbf16>
    tpu.vector_store %arg6[%c0_11, %c0_12], %11 {strides = array<i32>} : memref<128x64xbf16, #tpu.memory_space<vmem>>, vector<128x64xbf16>,
    return
  }
  func.func @transform_0(%arg0: i32) -> (i32, i32) {
    %c0_i32 = arith.constant 0 : i32
    %c0_i32_0 = arith.constant 0 : i32
    return %arg0, %c0_i32 : i32, i32
  }
  func.func @transform_1(%arg0: i32) -> (i32, i32) {
    %c0_i32 = arith.constant 0 : i32
    %c0_i32_0 = arith.constant 0 : i32
    %c0_i32_1 = arith.constant 0 : i32
    return %c0_i32, %c0_i32_0 : i32, i32
  }
  func.func @transform_2(%arg0: i32) -> (i32, i32) {
    %c0_i32 = arith.constant 0 : i32
    %c0_i32_0 = arith.constant 0 : i32
    %c0_i32_1 = arith.constant 0 : i32
    return %c0_i32, %c0_i32_0 : i32, i32
  }
  func.func @transform_3(%arg0: i32) -> (i32, i32) {
    %c0_i32 = arith.constant 0 : i32
    %c0_i32_0 = arith.constant 0 : i32
    %c0_i32_1 = arith.constant 0 : i32
    return %c0_i32, %c0_i32_0 : i32, i32
  }
  func.func @transform_4(%arg0: i32) -> (i32, i32) {
    %c0_i32 = arith.constant 0 : i32
    %c0_i32_0 = arith.constant 0 : i32
    return %arg0, %c0_i32 : i32, i32
  }
  func.func @transform_5(%arg0: i32) -> (i32, i32) {
    %c0_i32 = arith.constant 0 : i32
    %c0_i32_0 = arith.constant 0 : i32
    return %arg0, %c0_i32 : i32, i32
  }
}

</mosaic_0001>

<llo_original>
// kernel: tpu_custom_call.1
$region0: #{tpu_custom_call.1}
  #allocation0 [shape = 'u32[]', space=smem, size = 0x4, offset = 0x4, fixed_abs, tag = 'smem constant byte address 0x4 - core index']
  #allocation1 [shape = 'u32[144,128]{1,0:T(1,128)}', space=vmem, size = 0x12000, scoped, tag = 'internal scratch']
  %s0 = inlined_call_operand.vmem [shape: f32[384,16], index: 0, kind: input, shape index: {}]
  %s1 = inlined_call_operand.vmem [shape: f32[16,64], index: 1, kind: input, shape index: {}]
  %s2 = inlined_call_operand.vmem [shape: f32[1,64], index: 2, kind: input, shape index: {}]
  %s3 = inlined_call_operand.vmem [shape: f32[64,64], index: 3, kind: input, shape index: {}]
  %s4 = inlined_call_operand.vmem [shape: f32[384,64], index: 4, kind: output, shape index: {0}]
  %s5 = inlined_call_operand.vmem [shape: bf16[384,64], index: 5, kind: output, shape index: {1}]
  %6 = xla_tuple %s4, %s5
  %s7 = sld [smem:[#allocation0]]
  $region57: #{tpu_custom_call.1} parent=0
    _
  %s9 = ssub.s32 1, %s7
  %s10 = scalar_select 0, %s9, %s7
  loop: start=0, step=1, limit=5
  $region2: #{tpu_custom_call.1} parent=0 // loop_pre_header
    _
  $region3: #{tpu_custom_call.1} parent=0 // loop_header
    %s12 = sphi 0, %s16
    %p13 = scmp.ge.s32.totalorder %s12, 5
    %s22 = sphi 0, %s24
    %s25 = sphi 0, %s22
    %s26 = sphi 0, %s25
    %s42 = sphi 0, %s26
    %s46 = sphi 0, %s46
    %s48 = sphi 0, %s46
    %s49 = sphi 0, %s48
    %s63 = sphi 0, %s49
    %s67 = sphi 0, %s67
    %s69 = sphi 0, %s67
    %s70 = sphi 0, %s69
    %s84 = sphi 0, %s70
    %s88 = sphi 0, %s88
    %s90 = sphi 0, %s88
    %s91 = sphi 0, %s90
    %s105 = sphi 0, %s91
    %s111 = sphi 0, %s113
    %s114 = sphi 0, %s111
    %s115 = sphi 0, %s114
    %s131 = sphi 0, %s115
    %s137 = sphi 0, %s139
    %s140 = sphi 0, %s137
    %s141 = sphi 0, %s140
    %s157 = sphi 0, %s141
  $region4: #{tpu_custom_call.1} parent=0 // loop_header_branch
    %15 = sbr.rel (%p13) target = $region8
  $region5: #{tpu_custom_call.1} parent=0 // loop_body
    %s17 = ssub.s32 %s12, 1
    %s18 = ssub.s32 %s12, 2
    %s19 = sadd.s32 %s12, 1
    %s20 = ssub.s32 %s12, %s19
    %p21 = scmp.eq.s32.totalorder %s20, 0
    %s23 = sadd.s32 %s22, 1
    %s24 = scalar_select %p21, %s22, %s23
    %p27 = pneg %p21
    %p28 = scmp.eq.s32.totalorder %s12, 2
    %p29 = por %p27, %p28
    %p30 = scmp.ne.s32.totalorder %s22, %s25
    %p31 = scmp.eq.s32.totalorder %s12, 0
    %p32 = por %p30, %p31
    %p33 = scmp.ne.s32.totalorder %s22, %s25
    %p34 = scmp.eq.s32.totalorder %s17, 2
    %p35 = por %p33, %p34
    %p36 = scmp.ne.s32.totalorder %s25, %s26
    %p37 = scmp.eq.s32.totalorder %s17, 0
    %p38 = por %p36, %p37
    %p39 = scmp.ne.s32.totalorder %s25, %s26
    %p40 = scmp.eq.s32.totalorder %s18, 2
    %p41 = por %p39, %p40
    %p43 = scmp.ne.s32.totalorder %s26, %s42
    %p44 = scmp.eq.s32.totalorder %s18, 0
    %p45 = por %p43, %p44
    %s47 = sadd.s32 %s46, 1
    %p50 = scmp.eq.s32.totalorder %s12, 2
    %p51 = scmp.ne.s32.totalorder %s46, %s48
    %p52 = scmp.eq.s32.totalorder %s12, 0
    %p53 = por %p51, %p52
    %p54 = scmp.ne.s32.totalorder %s46, %s48
    %p55 = scmp.eq.s32.totalorder %s17, 2
    %p56 = por %p54, %p55
    %p57 = scmp.ne.s32.totalorder %s48, %s49
    %p58 = scmp.eq.s32.totalorder %s17, 0
    %p59 = por %p57, %p58
    %p60 = scmp.ne.s32.totalorder %s48, %s49
    %p61 = scmp.eq.s32.totalorder %s18, 2
    %p62 = por %p60, %p61
    %p64 = scmp.ne.s32.totalorder %s49, %s63
    %p65 = scmp.eq.s32.totalorder %s18, 0
    %p66 = por %p64, %p65
    %s68 = sadd.s32 %s67, 1
    %p71 = scmp.eq.s32.totalorder %s12, 2
    %p72 = scmp.ne.s32.totalorder %s67, %s69
    %p73 = scmp.eq.s32.totalorder %s12, 0
    %p74 = por %p72, %p73
    %p75 = scmp.ne.s32.totalorder %s67, %s69
    %p76 = scmp.eq.s32.totalorder %s17, 2
    %p77 = por %p75, %p76
    %p78 = scmp.ne.s32.totalorder %s69, %s70
    %p79 = scmp.eq.s32.totalorder %s17, 0
    %p80 = por %p78, %p79
    %p81 = scmp.ne.s32.totalorder %s69, %s70
    %p82 = scmp.eq.s32.totalorder %s18, 2
    %p83 = por %p81, %p82
    %p85 = scmp.ne.s32.totalorder %s70, %s84
    %p86 = scmp.eq.s32.totalorder %s18, 0
    %p87 = por %p85, %p86
    %s89 = sadd.s32 %s88, 1
    %p92 = scmp.eq.s32.totalorder %s12, 2
    %p93 = scmp.ne.s32.totalorder %s88, %s90
    %p94 = scmp.eq.s32.totalorder %s12, 0
    %p95 = por %p93, %p94
    %p96 = scmp.ne.s32.totalorder %s88, %s90
    %p97 = scmp.eq.s32.totalorder %s17, 2
    %p98 = por %p96, %p97
    %p99 = scmp.ne.s32.totalorder %s90, %s91
    %p100 = scmp.eq.s32.totalorder %s17, 0
    %p101 = por %p99, %p100
    %p102 = scmp.ne.s32.totalorder %s90, %s91
    %p103 = scmp.eq.s32.totalorder %s18, 2
    %p104 = por %p102, %p103
    %p106 = scmp.ne.s32.totalorder %s91, %s105
    %p107 = scmp.eq.s32.totalorder %s18, 0
    %p108 = por %p106, %p107
    %s109 = ssub.s32 %s12, %s19
    %p110 = scmp.eq.s32.totalorder %s109, 0
    %s112 = sadd.s32 %s111, 1
    %s113 = scalar_select %p110, %s111, %s112
    %p116 = pneg %p110
    %p117 = scmp.eq.s32.totalorder %s12, 2
    %p118 = por %p116, %p117
    %p119 = scmp.ne.s32.totalorder %s111, %s114
    %p120 = scmp.eq.s32.totalorder %s12, 0
    %p121 = por %p119, %p120
    %p122 = scmp.ne.s32.totalorder %s111, %s114
    %p123 = scmp.eq.s32.totalorder %s17, 2
    %p124 = por %p122, %p123
    %p125 = scmp.ne.s32.totalorder %s114, %s115
    %p126 = scmp.eq.s32.totalorder %s17, 0
    %p127 = por %p125, %p126
    %p128 = scmp.ne.s32.totalorder %s114, %s115
    %p129 = scmp.eq.s32.totalorder %s18, 2
    %p130 = por %p128, %p129
    %p132 = scmp.ne.s32.totalorder %s115, %s131
    %p133 = scmp.eq.s32.totalorder %s18, 0
    %p134 = por %p132, %p133
    %s135 = ssub.s32 %s12, %s19
    %p136 = scmp.eq.s32.totalorder %s135, 0
    %s138 = sadd.s32 %s137, 1
    %s139 = scalar_select %p136, %s137, %s138
    %p142 = pneg %p136
    %p143 = scmp.eq.s32.totalorder %s12, 2
    %p144 = por %p142, %p143
    %p145 = scmp.ne.s32.totalorder %s137, %s140
    %p146 = scmp.eq.s32.totalorder %s12, 0
    %p147 = por %p145, %p146
    %p148 = scmp.ne.s32.totalorder %s137, %s140
    %p149 = scmp.eq.s32.totalorder %s17, 2
    %p150 = por %p148, %p149
    %p151 = scmp.ne.s32.totalorder %s140, %s141
    %p152 = scmp.eq.s32.totalorder %s17, 0
    %p153 = por %p151, %p152
    %p154 = scmp.ne.s32.totalorder %s140, %s141
    %p155 = scmp.eq.s32.totalorder %s18, 2
    %p156 = por %p154, %p155
    %p158 = scmp.ne.s32.totalorder %s141, %s157
    %p159 = scmp.eq.s32.totalorder %s18, 0
    %p160 = por %p158, %p159
    %p161 = scmp.le.s32.totalorder 1, %s12
    %p162 = scmp.lt.s32.totalorder %s12, 4
    %p163 = pnand %p161, %p162
    %p164 = pneg %p163
    // Predicated region
    $region9: #{tpu_custom_call.1} parent=5 // pred_check
      _
    $region10: #{tpu_custom_call.1} parent=5 // pred_check_branch
      %166 = sbr.rel (%p163) target = $region12
    $region11: #{tpu_custom_call.1} parent=5 // pred_region
      %s167 = ssub.s32 %s12, 1
      // Predicated region
      $region13: #{tpu_custom_call.1} parent=11 // pred_check
        %p168 = pneg %p59
      $region14: #{tpu_custom_call.1} parent=11 // pred_check_branch
        %170 = sbr.rel (%p168) target = $region16
      $region15: #{tpu_custom_call.1} parent=11 // pred_region
        _
      $region16: #{tpu_custom_call.1} parent=11 // pred_fallthru
        _
      // Predicated region
      $region17: #{tpu_custom_call.1} parent=11 // pred_check
        %p171 = pneg %p80
      $region18: #{tpu_custom_call.1} parent=11 // pred_check_branch
        %173 = sbr.rel (%p171) target = $region20
      $region19: #{tpu_custom_call.1} parent=11 // pred_region
        _
      $region20: #{tpu_custom_call.1} parent=11 // pred_fallthru
        _
      // Predicated region
      $region21: #{tpu_custom_call.1} parent=11 // pred_check
        %p174 = pneg %p101
      $region22: #{tpu_custom_call.1} parent=11 // pred_check_branch
        %176 = sbr.rel (%p174) target = $region24
      $region23: #{tpu_custom_call.1} parent=11 // pred_region
        _
      $region24: #{tpu_custom_call.1} parent=11 // pred_fallthru
        _
    $region12: #{tpu_custom_call.1} parent=5 // pred_fallthru
      _
    %p177 = scmp.lt.s32.totalorder %s12, 3
    // Predicated region
    $region25: #{tpu_custom_call.1} parent=5 // pred_check
      %p178 = pneg %p177
    $region26: #{tpu_custom_call.1} parent=5 // pred_check_branch
      %180 = sbr.rel (%p178) target = $region28
    $region27: #{tpu_custom_call.1} parent=5 // pred_region
      // Predicated region
      $region29: #{tpu_custom_call.1} parent=27 // pred_check
        %p181 = pneg %p32
      $region30: #{tpu_custom_call.1} parent=27 // pred_check_branch
        %183 = sbr.rel (%p181) target = $region32
      $region31: #{tpu_custom_call.1} parent=27 // pred_region
        %s184 = smul.u32 16, %s12
        %p185 = scmp.lt.s32.totalorder %s184, 47
        %s186 = scalar_select %p185, %s184, 47
        %s187 = smul.addr %s186, 8
        %s188 = scalar_lea.vmem %s0, %s187
        %s189 = smul.u32 16, %s12
      $region32: #{tpu_custom_call.1} parent=27 // pred_fallthru
        _
    $region28: #{tpu_custom_call.1} parent=5 // pred_fallthru
      _
    %p190 = scmp.le.s32.totalorder 1, %s12
    %p191 = scmp.lt.s32.totalorder %s12, 4
    %p192 = pnand %p190, %p191
    %p193 = pneg %p192
    // Predicated region
    $region33: #{tpu_custom_call.1} parent=5 // pred_check
      _
    $region34: #{tpu_custom_call.1} parent=5 // pred_check_branch
      %195 = sbr.rel (%p192) target = $region36
    $region35: #{tpu_custom_call.1} parent=5 // pred_region
      %s196 = ssub.s32 %s12, 1
      %s197 = smul.u32 16, %s17
      %p198 = scmp.lt.s32.totalorder %s197, 47
      %s199 = scalar_select %p198, %s197, 47
      %s200 = smul.addr %s199, 8
      %s201 = scalar_lea.vmem %s0, %s200
      %p202 = pneg %p38
      %p203 = pneg %p35
      %p204 = pneg %p59
      %p205 = pneg %p56
      %p206 = pneg %p80
      %p207 = pneg %p77
      %p208 = pneg %p101
      %p209 = pneg %p98
      %p210 = pneg %p127
      %p211 = pneg %p124
      %s212 = smul.u32 16, %s17
      %p213 = scmp.lt.s32.totalorder %s212, 47
      %s214 = scalar_select %p213, %s212, 47
      %s215 = smul.addr %s214, 8
      %s216 = scalar_lea.vmem %s4, %s215
      %p217 = pneg %p153
      %p218 = pneg %p150
      %s219 = smul.u32 16, %s17
      %p220 = scmp.lt.s32.totalorder %s219, 47
      %s221 = scalar_select %p220, %s219, 47
      %s222 = smul.addr %s221, 4
      %s223 = scalar_lea.vmem %s5, %s222
      %s224 = smul.u32 16, %s17
      %p225 = scmp.lt.s32.totalorder %s224, 47
      %s226 = scalar_select %p225, %s224, 47
      %s227 = smul.addr %s226, 8
      %s228 = scalar_lea.vmem %s0, %s227
      %s229 = smul.u32 16, %s17
      %s230 = smul.u32 16, %s17
      %p231 = scmp.lt.s32.totalorder %s230, 47
      %s232 = scalar_select %p231, %s230, 47
      %s233 = smul.addr %s232, 8
      %s234 = scalar_lea.vmem %s4, %s233
      %s235 = smul.u32 16, %s17
      %s236 = smul.u32 16, %s17
      %p237 = scmp.lt.s32.totalorder %s236, 47
      %s238 = scalar_select %p237, %s236, 47
      %s239 = smul.addr %s238, 4
      %s240 = scalar_lea.vmem %s5, %s239
      %s241 = smul.u32 16, %s17
      %v242 = vld [vmem:[%s228] sm:$0xff]
      %v243 = vld [vmem:[%s228 + $0x8] sm:$0xff]
      %v244 = vld [vmem:[%s228 + $0x10] sm:$0xff]
      %v245 = vld [vmem:[%s228 + $0x18] sm:$0xff]
      %v246 = vld [vmem:[%s228 + $0x20] sm:$0xff]
      %v247 = vld [vmem:[%s228 + $0x28] sm:$0xff]
      %v248 = vld [vmem:[%s228 + $0x30] sm:$0xff]
      %v249 = vld [vmem:[%s228 + $0x38] sm:$0xff]
      %v250 = vld [vmem:[%s228 + $0x40] sm:$0xff]
      %v251 = vld [vmem:[%s228 + $0x48] sm:$0xff]
      %v252 = vld [vmem:[%s228 + $0x50] sm:$0xff]
      %v253 = vld [vmem:[%s228 + $0x58] sm:$0xff]
      %v254 = vld [vmem:[%s228 + $0x60] sm:$0xff]
      %v255 = vld [vmem:[%s228 + $0x68] sm:$0xff]
      %v256 = vld [vmem:[%s228 + $0x70] sm:$0xff]
      %v257 = vld [vmem:[%s228 + $0x78] sm:$0xff]
      %v258 = vld [vmem:[%s1] sm:$0xff]
      %v259 = vld [vmem:[%s1 + $0x8] sm:$0xff]
      %v260 = vld [vmem:[%s2] sm:$0x1]
      %v262 = vlaneseq
      %v263 = vshrl.u32 %v262, 7
      %v264 = vsub.s32 0, %v263
      %v265 = vrot.slane %v260, %v264
      %vm267 = vcmask 130048
      %v269 = vsel %vm267, %v242, 0
      %v272 = vsel %vm267, %v243, 0
      %v275 = vsel %vm267, %v244, 0
      %v278 = vsel %vm267, %v245, 0
      %v281 = vsel %vm267, %v246, 0
      %v284 = vsel %vm267, %v247, 0
      %v287 = vsel %vm267, %v248, 0
      %v290 = vsel %vm267, %v249, 0
      %v293 = vsel %vm267, %v250, 0
      %v296 = vsel %vm267, %v251, 0
      %v299 = vsel %vm267, %v252, 0
      %v302 = vsel %vm267, %v253, 0
      %v305 = vsel %vm267, %v254, 0
      %v308 = vsel %vm267, %v255, 0
      %v311 = vsel %vm267, %v256, 0
      %v314 = vsel %vm267, %v257, 0
      %316 = vmatprep.subr.mxu0 0.0
      %317 = vmatpush1.msra.mxu0 %v258
      %318 = vmatprep.subr.mxu0 0.0
      %319 = vmatpush1.msra.mxu0 %v259
      %320 = vmatprep.subr.mxu0 0.0
      %321 = vmatpush1.msra.mxu0 0.0
      %322 = vmatprep.subr.mxu0 0.0
      %323 = vmatpush1.msra.mxu0 0.0
      %324 = vmatprep.subr.mxu0 0.0
      %325 = vmatpush1.msra.mxu0 0.0
      %326 = vmatprep.subr.mxu0 0.0
      %327 = vmatpush1.msra.mxu0 0.0
      %328 = vmatprep.subr.mxu0 0.0
      %329 = vmatpush1.msra.mxu0 0.0
      %330 = vmatprep.subr.mxu0 0.0
      %331 = vmatpush1.msra.mxu0 0.0
      %332 = vmatprep.subr.mxu0 0.0
      %333 = vmatpush1.msra.mxu0 0.0
      %334 = vmatprep.subr.mxu0 0.0
      %335 = vmatpush1.msra.mxu0 0.0
      %336 = vmatprep.subr.mxu0 0.0
      %337 = vmatpush1.msra.mxu0 0.0
      %338 = vmatprep.subr.mxu0 0.0
      %339 = vmatpush1.msra.mxu0 0.0
      %340 = vmatprep.subr.mxu0 0.0
      %341 = vmatpush1.msra.mxu0 0.0
      %342 = vmatprep.subr.mxu0 0.0
      %343 = vmatpush1.msra.mxu0 0.0
      %344 = vmatprep.subr.mxu0 0.0
      %345 = vmatpush1.msra.mxu0 0.0
      %346 = vmatprep.subr.mxu0 0.0
      %347 = vmatpush1.msra.mxu0 0.0
      %348 = vmatprep.subr.mxu0 0.0
      %349 = vmatpush1.msra.mxu0 0.0
      %350 = vmatprep.subr.mxu0 0.0
      %351 = vmatpush1.msra.mxu0 0.0
      %352 = vmatprep.subr.mxu0 0.0
      %353 = vmatpush1.msra.mxu0 0.0
      %354 = vmatprep.subr.mxu0 0.0
      %355 = vmatpush1.msra.mxu0 0.0
      %356 = vmatprep.subr.mxu0 0.0
      %357 = vmatpush1.msra.mxu0 0.0
      %358 = vmatprep.subr.mxu0 0.0
      %359 = vmatpush1.msra.mxu0 0.0
      %360 = vmatprep.subr.mxu0 0.0
      %361 = vmatpush1.msra.mxu0 0.0
      %362 = vmatprep.subr.mxu0 0.0
      %363 = vmatpush1.msra.mxu0 0.0
      %364 = vmatprep.subr.mxu0 0.0
      %365 = vmatpush1.msra.mxu0 0.0
      %366 = vmatprep.subr.mxu0 0.0
      %367 = vmatpush1.msra.mxu0 0.0
      %368 = vmatprep.subr.mxu0 0.0
      %369 = vmatpush1.msra.mxu0 0.0
      %370 = vmatprep.subr.mxu0 0.0
      %371 = vmatpush1.msra.mxu0 0.0
      %372 = vmatprep.subr.mxu0 0.0
      %373 = vmatpush1.msra.mxu0 0.0
      %374 = vmatprep.subr.mxu0 0.0
      %375 = vmatpush1.msra.mxu0 0.0
      %376 = vmatprep.subr.mxu0 0.0
      %377 = vmatpush1.msra.mxu0 0.0
      %378 = vmatprep.subr.mxu0 0.0
      %379 = vmatpush1.msra.mxu0 0.0
      %380 = vmatprep.mubr.f32.mxu0 0.0
      %381 = vmatmul.mubr.f32.gmra.mrb[0].mxu0 %v269
      %v382 = vpop.f32.mrb[0].mxu0
      %v383 = vadd.f32 %v265, %v382
      %v384 = vpop.f32.mrb[0].mxu0
      %385 = vmatprep.mubr.f32.mxu0 0.0
      %386 = vmatmul.mubr.f32.gmra.mrb[0].mxu0 %v272
      %v387 = vpop.f32.mrb[0].mxu0
      %v388 = vadd.f32 %v265, %v387
      %v389 = vpop.f32.mrb[0].mxu0
      %390 = vmatprep.mubr.f32.mxu0 0.0
      %391 = vmatmul.mubr.f32.gmra.mrb[0].mxu0 %v275
      %v392 = vpop.f32.mrb[0].mxu0
      %v393 = vadd.f32 %v265, %v392
      %v394 = vpop.f32.mrb[0].mxu0
      %395 = vmatprep.mubr.f32.mxu0 0.0
      %396 = vmatmul.mubr.f32.gmra.mrb[0].mxu0 %v278
      %v397 = vpop.f32.mrb[0].mxu0
      %v398 = vadd.f32 %v265, %v397
      %v399 = vpop.f32.mrb[0].mxu0
      %400 = vmatprep.mubr.f32.mxu0 0.0
      %401 = vmatmul.mubr.f32.gmra.mrb[0].mxu0 %v281
      %v402 = vpop.f32.mrb[0].mxu0
      %v403 = vadd.f32 %v265, %v402
      %v404 = vpop.f32.mrb[0].mxu0
      %405 = vmatprep.mubr.f32.mxu0 0.0
      %406 = vmatmul.mubr.f32.gmra.mrb[0].mxu0 %v284
      %v407 = vpop.f32.mrb[0].mxu0
      %v408 = vadd.f32 %v265, %v407
      %v409 = vpop.f32.mrb[0].mxu0
      %410 = vmatprep.mubr.f32.mxu0 0.0
      %411 = vmatmul.mubr.f32.gmra.mrb[0].mxu0 %v287
      %v412 = vpop.f32.mrb[0].mxu0
      %v413 = vadd.f32 %v265, %v412
      %v414 = vpop.f32.mrb[0].mxu0
      %415 = vmatprep.mubr.f32.mxu0 0.0
      %416 = vmatmul.mubr.f32.gmra.mrb[0].mxu0 %v290
      %v417 = vpop.f32.mrb[0].mxu0
      %v418 = vadd.f32 %v265, %v417
      %v419 = vpop.f32.mrb[0].mxu0
      %420 = vmatprep.mubr.f32.mxu0 0.0
      %421 = vmatmul.mubr.f32.gmra.mrb[0].mxu0 %v293
      %v422 = vpop.f32.mrb[0].mxu0
      %v423 = vadd.f32 %v265, %v422
      %v424 = vpop.f32.mrb[0].mxu0
      %425 = vmatprep.mubr.f32.mxu0 0.0
      %426 = vmatmul.mubr.f32.gmra.mrb[0].mxu0 %v296
      %v427 = vpop.f32.mrb[0].mxu0
      %v428 = vadd.f32 %v265, %v427
      %v429 = vpop.f32.mrb[0].mxu0
      %430 = vmatprep.mubr.f32.mxu0 0.0
      %431 = vmatmul.mubr.f32.gmra.mrb[0].mxu0 %v299
      %v432 = vpop.f32.mrb[0].mxu0
      %v433 = vadd.f32 %v265, %v432
      %v434 = vpop.f32.mrb[0].mxu0
      %435 = vmatprep.mubr.f32.mxu0 0.0
      %436 = vmatmul.mubr.f32.gmra.mrb[0].mxu0 %v302
      %v437 = vpop.f32.mrb[0].mxu0
      %v438 = vadd.f32 %v265, %v437
      %v439 = vpop.f32.mrb[0].mxu0
      %440 = vmatprep.mubr.f32.mxu0 0.0
      %441 = vmatmul.mubr.f32.gmra.mrb[0].mxu0 %v305
      %v442 = vpop.f32.mrb[0].mxu0
      %v443 = vadd.f32 %v265, %v442
      %v444 = vpop.f32.mrb[0].mxu0
      %445 = vmatprep.mubr.f32.mxu0 0.0
      %446 = vmatmul.mubr.f32.gmra.mrb[0].mxu0 %v308
      %v447 = vpop.f32.mrb[0].mxu0
      %v448 = vadd.f32 %v265, %v447
      %v449 = vpop.f32.mrb[0].mxu0
      %450 = vmatprep.mubr.f32.mxu0 0.0
      %451 = vmatmul.mubr.f32.gmra.mrb[0].mxu0 %v311
      %v452 = vpop.f32.mrb[0].mxu0
      %v453 = vadd.f32 %v265, %v452
      %v454 = vpop.f32.mrb[0].mxu0
      %455 = vmatprep.mubr.f32.mxu0 0.0
      %456 = vmatmul.mubr.f32.gmra.mrb[0].mxu0 %v314
      %v457 = vpop.f32.mrb[0].mxu0
      %v458 = vadd.f32 %v265, %v457
      %v459 = vpop.f32.mrb[0].mxu0
      %460 = vdwg.mxu0
      %v461 = vmax.f32 %v383, 0.0
      %v462 = vmax.f32 %v388, 0.0
      %v463 = vmax.f32 %v393, 0.0
      %v464 = vmax.f32 %v398, 0.0
      %v465 = vmax.f32 %v403, 0.0
      %v466 = vmax.f32 %v408, 0.0
      %v467 = vmax.f32 %v413, 0.0
      %v468 = vmax.f32 %v418, 0.0
      %v469 = vmax.f32 %v423, 0.0
      %v470 = vmax.f32 %v428, 0.0
      %v471 = vmax.f32 %v433, 0.0
      %v472 = vmax.f32 %v438, 0.0
      %v473 = vmax.f32 %v443, 0.0
      %v474 = vmax.f32 %v448, 0.0
      %v475 = vmax.f32 %v453, 0.0
      %v476 = vmax.f32 %v458, 0.0
      %vm477 = vcmask 523264
      %478 = vst.msk [vmem:[%s234] sm:$0xff] %vm477, %v461
      %479 = vst.msk [vmem:[%s234 + $0x8] sm:$0xff] %vm477, %v462
      %480 = vst.msk [vmem:[%s234 + $0x10] sm:$0xff] %vm477, %v463
      %481 = vst.msk [vmem:[%s234 + $0x18] sm:$0xff] %vm477, %v464
      %482 = vst.msk [vmem:[%s234 + $0x20] sm:$0xff] %vm477, %v465
      %483 = vst.msk [vmem:[%s234 + $0x28] sm:$0xff] %vm477, %v466
      %484 = vst.msk [vmem:[%s234 + $0x30] sm:$0xff] %vm477, %v467
      %485 = vst.msk [vmem:[%s234 + $0x38] sm:$0xff] %vm477, %v468
      %486 = vst.msk [vmem:[%s234 + $0x40] sm:$0xff] %vm477, %v469
      %487 = vst.msk [vmem:[%s234 + $0x48] sm:$0xff] %vm477, %v470
      %488 = vst.msk [vmem:[%s234 + $0x50] sm:$0xff] %vm477, %v471
      %489 = vst.msk [vmem:[%s234 + $0x58] sm:$0xff] %vm477, %v472
      %490 = vst.msk [vmem:[%s234 + $0x60] sm:$0xff] %vm477, %v473
      %491 = vst.msk [vmem:[%s234 + $0x68] sm:$0xff] %vm477, %v474
      %492 = vst.msk [vmem:[%s234 + $0x70] sm:$0xff] %vm477, %v475
      %493 = vst.msk [vmem:[%s234 + $0x78] sm:$0xff] %vm477, %v476
      %v494 = vld [vmem:[%s3] sm:$0xff]
      %v495 = vld [vmem:[%s3 + $0x8] sm:$0xff]
      %v496 = vld [vmem:[%s3 + $0x10] sm:$0xff]
      %v497 = vld [vmem:[%s3 + $0x18] sm:$0xff]
      %v498 = vld [vmem:[%s3 + $0x20] sm:$0xff]
      %v499 = vld [vmem:[%s3 + $0x28] sm:$0xff]
      %v500 = vld [vmem:[%s3 + $0x30] sm:$0xff]
      %v501 = vld [vmem:[%s3 + $0x38] sm:$0xff]
      %v503 = vsel %vm477, %v461, 0
      %v506 = vsel %vm477, %v462, 0
      %v509 = vsel %vm477, %v463, 0
      %v512 = vsel %vm477, %v464, 0
      %v515 = vsel %vm477, %v465, 0
      %v518 = vsel %vm477, %v466, 0
      %v521 = vsel %vm477, %v467, 0
      %v524 = vsel %vm477, %v468, 0
      %v527 = vsel %vm477, %v469, 0
      %v530 = vsel %vm477, %v470, 0
      %v533 = vsel %vm477, %v471, 0
      %v536 = vsel %vm477, %v472, 0
      %v539 = vsel %vm477, %v473, 0
      %v542 = vsel %vm477, %v474, 0
      %v545 = vsel %vm477, %v475, 0
      %v548 = vsel %vm477, %v476, 0
      %550 = vmatprep.subr.mxu0 0.0
      %551 = vmatpush1.msra.mxu0 %v494
      %552 = vmatprep.subr.mxu0 0.0
      %553 = vmatpush1.msra.mxu0 %v495
      %554 = vmatprep.subr.mxu0 0.0
      %555 = vmatpush1.msra.mxu0 %v496
      %556 = vmatprep.subr.mxu0 0.0
      %557 = vmatpush1.msra.mxu0 %v497
      %558 = vmatprep.subr.mxu0 0.0
      %559 = vmatpush1.msra.mxu0 %v498
      %560 = vmatprep.subr.mxu0 0.0
      %561 = vmatpush1.msra.mxu0 %v499
      %562 = vmatprep.subr.mxu0 0.0
      %563 = vmatpush1.msra.mxu0 %v500
      %564 = vmatprep.subr.mxu0 0.0
      %565 = vmatpush1.msra.mxu0 %v501
      %566 = vmatprep.subr.mxu0 0.0
      %567 = vmatpush1.msra.mxu0 0.0
      %568 = vmatprep.subr.mxu0 0.0
      %569 = vmatpush1.msra.mxu0 0.0
      %570 = vmatprep.subr.mxu0 0.0
      %571 = vmatpush1.msra.mxu0 0.0
      %572 = vmatprep.subr.mxu0 0.0
      %573 = vmatpush1.msra.mxu0 0.0
      %574 = vmatprep.subr.mxu0 0.0
      %575 = vmatpush1.msra.mxu0 0.0
      %576 = vmatprep.subr.mxu0 0.0
      %577 = vmatpush1.msra.mxu0 0.0
      %578 = vmatprep.subr.mxu0 0.0
      %579 = vmatpush1.msra.mxu0 0.0
      %580 = vmatprep.subr.mxu0 0.0
      %581 = vmatpush1.msra.mxu0 0.0
      %582 = vmatprep.subr.mxu0 0.0
      %583 = vmatpush1.msra.mxu0 0.0
      %584 = vmatprep.subr.mxu0 0.0
      %585 = vmatpush1.msra.mxu0 0.0
      %586 = vmatprep.subr.mxu0 0.0
      %587 = vmatpush1.msra.mxu0 0.0
      %588 = vmatprep.subr.mxu0 0.0
      %589 = vmatpush1.msra.mxu0 0.0
      %590 = vmatprep.subr.mxu0 0.0
      %591 = vmatpush1.msra.mxu0 0.0
      %592 = vmatprep.subr.mxu0 0.0
      %593 = vmatpush1.msra.mxu0 0.0
      %594 = vmatprep.subr.mxu0 0.0
      %595 = vmatpush1.msra.mxu0 0.0
      %596 = vmatprep.subr.mxu0 0.0
      %597 = vmatpush1.msra.mxu0 0.0
      %598 = vmatprep.subr.mxu0 0.0
      %599 = vmatpush1.msra.mxu0 0.0
      %600 = vmatprep.subr.mxu0 0.0
      %601 = vmatpush1.msra.mxu0 0.0
      %602 = vmatprep.subr.mxu0 0.0
      %603 = vmatpush1.msra.mxu0 0.0
      %604 = vmatprep.subr.mxu0 0.0
      %605 = vmatpush1.msra.mxu0 0.0
      %606 = vmatprep.subr.mxu0 0.0
      %607 = vmatpush1.msra.mxu0 0.0
      %608 = vmatprep.subr.mxu0 0.0
      %609 = vmatpush1.msra.mxu0 0.0
      %610 = vmatprep.subr.mxu0 0.0
      %611 = vmatpush1.msra.mxu0 0.0
      %612 = vmatprep.subr.mxu0 0.0
      %613 = vmatpush1.msra.mxu0 0.0
      %614 = vmatprep.mubr.f32.mxu0 0.0
      %615 = vmatmul.mubr.f32.gmra.mrb[0].mxu0 %v503
      %v616 = vpop.f32.mrb[0].mxu0
      %v617 = vadd.f32 0.0, %v616
      %v618 = vpop.f32.mrb[0].mxu0
      %619 = vmatprep.mubr.f32.mxu0 0.0
      %620 = vmatmul.mubr.f32.gmra.mrb[0].mxu0 %v506
      %v621 = vpop.f32.mrb[0].mxu0
      %v622 = vadd.f32 0.0, %v621
      %v623 = vpop.f32.mrb[0].mxu0
      %624 = vmatprep.mubr.f32.mxu0 0.0
      %625 = vmatmul.mubr.f32.gmra.mrb[0].mxu0 %v509
      %v626 = vpop.f32.mrb[0].mxu0
      %v627 = vadd.f32 0.0, %v626
      %v628 = vpop.f32.mrb[0].mxu0
      %629 = vmatprep.mubr.f32.mxu0 0.0
      %630 = vmatmul.mubr.f32.gmra.mrb[0].mxu0 %v512
      %v631 = vpop.f32.mrb[0].mxu0
      %v632 = vadd.f32 0.0, %v631
      %v633 = vpop.f32.mrb[0].mxu0
      %634 = vmatprep.mubr.f32.mxu0 0.0
      %635 = vmatmul.mubr.f32.gmra.mrb[0].mxu0 %v515
      %v636 = vpop.f32.mrb[0].mxu0
      %v637 = vadd.f32 0.0, %v636
      %v638 = vpop.f32.mrb[0].mxu0
      %639 = vmatprep.mubr.f32.mxu0 0.0
      %640 = vmatmul.mubr.f32.gmra.mrb[0].mxu0 %v518
      %v641 = vpop.f32.mrb[0].mxu0
      %v642 = vadd.f32 0.0, %v641
      %v643 = vpop.f32.mrb[0].mxu0
      %644 = vmatprep.mubr.f32.mxu0 0.0
      %645 = vmatmul.mubr.f32.gmra.mrb[0].mxu0 %v521
      %v646 = vpop.f32.mrb[0].mxu0
      %v647 = vadd.f32 0.0, %v646
      %v648 = vpop.f32.mrb[0].mxu0
      %649 = vmatprep.mubr.f32.mxu0 0.0
      %650 = vmatmul.mubr.f32.gmra.mrb[0].mxu0 %v524
      %v651 = vpop.f32.mrb[0].mxu0
      %v652 = vadd.f32 0.0, %v651
      %v653 = vpop.f32.mrb[0].mxu0
      %654 = vmatprep.mubr.f32.mxu0 0.0
      %655 = vmatmul.mubr.f32.gmra.mrb[0].mxu0 %v527
      %v656 = vpop.f32.mrb[0].mxu0
      %v657 = vadd.f32 0.0, %v656
      %v658 = vpop.f32.mrb[0].mxu0
      %659 = vmatprep.mubr.f32.mxu0 0.0
      %660 = vmatmul.mubr.f32.gmra.mrb[0].mxu0 %v530
      %v661 = vpop.f32.mrb[0].mxu0
      %v662 = vadd.f32 0.0, %v661
      %v663 = vpop.f32.mrb[0].mxu0
      %664 = vmatprep.mubr.f32.mxu0 0.0
      %665 = vmatmul.mubr.f32.gmra.mrb[0].mxu0 %v533
      %v666 = vpop.f32.mrb[0].mxu0
      %v667 = vadd.f32 0.0, %v666
      %v668 = vpop.f32.mrb[0].mxu0
      %669 = vmatprep.mubr.f32.mxu0 0.0
      %670 = vmatmul.mubr.f32.gmra.mrb[0].mxu0 %v536
      %v671 = vpop.f32.mrb[0].mxu0
      %v672 = vadd.f32 0.0, %v671
      %v673 = vpop.f32.mrb[0].mxu0
      %674 = vmatprep.mubr.f32.mxu0 0.0
      %675 = vmatmul.mubr.f32.gmra.mrb[0].mxu0 %v539
      %v676 = vpop.f32.mrb[0].mxu0
      %v677 = vadd.f32 0.0, %v676
      %v678 = vpop.f32.mrb[0].mxu0
      %679 = vmatprep.mubr.f32.mxu0 0.0
      %680 = vmatmul.mubr.f32.gmra.mrb[0].mxu0 %v542
      %v681 = vpop.f32.mrb[0].mxu0
      %v682 = vadd.f32 0.0, %v681
      %v683 = vpop.f32.mrb[0].mxu0
      %684 = vmatprep.mubr.f32.mxu0 0.0
      %685 = vmatmul.mubr.f32.gmra.mrb[0].mxu0 %v545
      %v686 = vpop.f32.mrb[0].mxu0
      %v687 = vadd.f32 0.0, %v686
      %v688 = vpop.f32.mrb[0].mxu0
      %689 = vmatprep.mubr.f32.mxu0 0.0
      %690 = vmatmul.mubr.f32.gmra.mrb[0].mxu0 %v548
      %v691 = vpop.f32.mrb[0].mxu0
      %v692 = vadd.f32 0.0, %v691
      %v693 = vpop.f32.mrb[0].mxu0
      %694 = vdwg.mxu0
      %v695 = vpack.c.bf16 %v622, %v617
      %v696 = vpack.c.bf16 %v632, %v627
      %v697 = vpack.c.bf16 %v642, %v637
      %v698 = vpack.c.bf16 %v652, %v647
      %v699 = vpack.c.bf16 %v662, %v657
      %v700 = vpack.c.bf16 %v672, %v667
      %v701 = vpack.c.bf16 %v682, %v677
      %v702 = vpack.c.bf16 %v692, %v687
      %v711 = vunpack.c.l.b16 %v695
      %v712 = vunpack.c.h.b16 %v695
      %v713 = vunpack.c.l.b16 %v696
      %v714 = vunpack.c.h.b16 %v696
      %v715 = vunpack.c.l.b16 %v697
      %v716 = vunpack.c.h.b16 %v697
      %v717 = vunpack.c.l.b16 %v698
      %v718 = vunpack.c.h.b16 %v698
      %v719 = vunpack.c.l.b16 %v699
      %v720 = vunpack.c.h.b16 %v699
      %v721 = vunpack.c.l.b16 %v700
      %v722 = vunpack.c.h.b16 %v700
      %v723 = vunpack.c.l.b16 %v701
      %v724 = vunpack.c.h.b16 %v701
      %v725 = vunpack.c.l.b16 %v702
      %v726 = vunpack.c.h.b16 %v702
      %v727 = vpack.c.b16 %v711, %v711
      %v728 = vpack.c.b16 %v712, %v712
      %v729 = vpack.c.b16 %v713, %v713
      %v730 = vpack.c.b16 %v714, %v714
      %v731 = vpack.c.b16 %v715, %v715
      %v732 = vpack.c.b16 %v716, %v716
      %v733 = vpack.c.b16 %v717, %v717
      %v734 = vpack.c.b16 %v718, %v718
      %v735 = vpack.c.b16 %v719, %v719
      %v736 = vpack.c.b16 %v720, %v720
      %v737 = vpack.c.b16 %v721, %v721
      %v738 = vpack.c.b16 %v722, %v722
      %v739 = vpack.c.b16 %v723, %v723
      %v740 = vpack.c.b16 %v724, %v724
      %v741 = vpack.c.b16 %v725, %v725
      %v742 = vpack.c.b16 %v726, %v726
      %vm759 = vcmask 519168
      %760 = vst.msk [vmem:[%s240] sm:$0xf] %vm759, %v727
      %761 = vst.msk [vmem:[%s240 + $0x4] sm:$0xf] %vm759, %v728
      %762 = vst.msk [vmem:[%s240 + $0x8] sm:$0xf] %vm759, %v729
      %763 = vst.msk [vmem:[%s240 + $0xc] sm:$0xf] %vm759, %v730
      %764 = vst.msk [vmem:[%s240 + $0x10] sm:$0xf] %vm759, %v731
      %765 = vst.msk [vmem:[%s240 + $0x14] sm:$0xf] %vm759, %v732
      %766 = vst.msk [vmem:[%s240 + $0x18] sm:$0xf] %vm759, %v733
      %767 = vst.msk [vmem:[%s240 + $0x1c] sm:$0xf] %vm759, %v734
      %768 = vst.msk [vmem:[%s240 + $0x20] sm:$0xf] %vm759, %v735
      %769 = vst.msk [vmem:[%s240 + $0x24] sm:$0xf] %vm759, %v736
      %770 = vst.msk [vmem:[%s240 + $0x28] sm:$0xf] %vm759, %v737
      %771 = vst.msk [vmem:[%s240 + $0x2c] sm:$0xf] %vm759, %v738
      %772 = vst.msk [vmem:[%s240 + $0x30] sm:$0xf] %vm759, %v739
      %773 = vst.msk [vmem:[%s240 + $0x34] sm:$0xf] %vm759, %v740
      %774 = vst.msk [vmem:[%s240 + $0x38] sm:$0xf] %vm759, %v741
      %775 = vst.msk [vmem:[%s240 + $0x3c] sm:$0xf] %vm759, %v742
      %s776 = smul.u32 16, %s17
      %p777 = scmp.lt.s32.totalorder %s776, 47
      %s778 = scalar_select %p777, %s776, 47
      %s779 = smul.addr %s778, 8
      %s780 = scalar_lea.vmem %s4, %s779
      %s781 = smul.u32 16, %s17
      %p782 = scmp.lt.s32.totalorder %s781, 47
      %s783 = scalar_select %p782, %s781, 47
      %s784 = smul.addr %s783, 4
      %s785 = scalar_lea.vmem %s5, %s784
      // Predicated region
      $region37: #{tpu_custom_call.1} parent=35 // pred_check
        %p786 = pneg %p124
      $region38: #{tpu_custom_call.1} parent=35 // pred_check_branch
        %788 = sbr.rel (%p786) target = $region40
      $region39: #{tpu_custom_call.1} parent=35 // pred_region
        %s789 = smul.u32 16, %s17
      $region40: #{tpu_custom_call.1} parent=35 // pred_fallthru
        _
      // Predicated region
      $region41: #{tpu_custom_call.1} parent=35 // pred_check
        %p790 = pneg %p150
      $region42: #{tpu_custom_call.1} parent=35 // pred_check_branch
        %792 = sbr.rel (%p790) target = $region44
      $region43: #{tpu_custom_call.1} parent=35 // pred_region
        %s793 = smul.u32 16, %s17
      $region44: #{tpu_custom_call.1} parent=35 // pred_fallthru
        _
    $region36: #{tpu_custom_call.1} parent=5 // pred_fallthru
      _
    %p794 = scmp.le.s32.totalorder 2, %s12
    // Predicated region
    $region45: #{tpu_custom_call.1} parent=5 // pred_check
      %p795 = pneg %p794
    $region46: #{tpu_custom_call.1} parent=5 // pred_check_branch
      %797 = sbr.rel (%p795) target = $region48
    $region47: #{tpu_custom_call.1} parent=5 // pred_region
      %s798 = ssub.s32 %s12, 2
      // Predicated region
      $region49: #{tpu_custom_call.1} parent=47 // pred_check
        %p799 = pneg %p130
      $region50: #{tpu_custom_call.1} parent=47 // pred_check_branch
        %801 = sbr.rel (%p799) target = $region52
      $region51: #{tpu_custom_call.1} parent=47 // pred_region
        %s802 = smul.u32 16, %s18
        %p803 = scmp.lt.s32.totalorder %s802, 47
        %s804 = scalar_select %p803, %s802, 47
        %s805 = smul.addr %s804, 8
        %s806 = scalar_lea.vmem %s4, %s805
      $region52: #{tpu_custom_call.1} parent=47 // pred_fallthru
        _
      // Predicated region
      $region53: #{tpu_custom_call.1} parent=47 // pred_check
        %p807 = pneg %p156
      $region54: #{tpu_custom_call.1} parent=47 // pred_check_branch
        %809 = sbr.rel (%p807) target = $region56
      $region55: #{tpu_custom_call.1} parent=47 // pred_region
        %s810 = smul.u32 16, %s18
        %p811 = scmp.lt.s32.totalorder %s810, 47
        %s812 = scalar_select %p811, %s810, 47
        %s813 = smul.addr %s812, 4
        %s814 = scalar_lea.vmem %s5, %s813
      $region56: #{tpu_custom_call.1} parent=47 // pred_fallthru
        _
    $region48: #{tpu_custom_call.1} parent=5 // pred_fallthru
      _
  $region6: #{tpu_custom_call.1} parent=0 // loop_footer
    %s16 = sadd.s32 1, %s12
  $region7: #{tpu_custom_call.1} parent=0 // loop_footer_branch
    %11 = sbr.rel target = $region3
  $region8: #{tpu_custom_call.1} parent=0 // loop_exit
    _

</llo_original>
